<compile_context>
chip_gen: v7x
topology: tpu7x:2x2x1
jax: 0.10.0
libtpu: 0.0.40
codegen_flags: <defaults>
</compile_context>

<pallas_src>
import math

import jax
import jax.numpy as jnp
from jax import lax
from jax.experimental import pallas as pl
from jax.experimental.pallas import tpu as pltpu


def sinusoidal_pe_table(max_len, d_model, dtype=jnp.float32):
    """Reference sinusoidal table, matching sinusoidal_init_ in the PyTorch code."""
    position = jnp.arange(max_len, dtype=jnp.float32)[:, None]
    div_term = jnp.exp(
        -math.log(10000.0) * jnp.arange(0, d_model, 2, dtype=jnp.float32) / d_model)
    pe = jnp.zeros((max_len, d_model), dtype=jnp.float32)
    pe = pe.at[:, 0::2].set(jnp.sin(position * div_term))
    pe = pe.at[:, 1::2].set(jnp.cos(position * div_term))
    return pe.astype(dtype)


def _pe_slab(tile_s, d_model, s0):
    """Sinusoidal PE for sequence positions [s0, s0+tile_s), shape (tile_s, 1, D).

    Single-sin phase trick (cos(x) = sin(x + pi/2)); exp(div_term) hoisted to a
    per-column (1, 1, D) vector.  No integer div/mod anywhere.
    """
    pos = (s0 + lax.broadcasted_iota(jnp.int32, (tile_s, 1, 1), 0)).astype(jnp.float32)
    d = lax.broadcasted_iota(jnp.int32, (1, 1, d_model), 2)
    half = jnp.right_shift(d, 1).astype(jnp.float32)
    inv_freq = jnp.exp(half * (-2.0 * math.log(10000.0) / d_model))       # (1,1,D)
    phase = jnp.bitwise_and(d, 1).astype(jnp.float32) * (0.5 * math.pi)   # (1,1,D)
    return jnp.sin(pos * inv_freq + phase)                                # (tile_s,1,D)


def _hash_keep_mask(shape, s0, batch, d_model, seed_u32, thresh):
    """Counter-based keep mask, P(keep) = 1 - thresh / 2**32.

    Pure uint32 VALU ops (murmur3 finalizer) -> portable across Mosaic and
    interpret mode; no TPU hardware PRNG.
    """
    s_i = s0 + lax.broadcasted_iota(jnp.int32, shape, 0)
    b_i = lax.broadcasted_iota(jnp.int32, shape, 1)
    d_i = lax.broadcasted_iota(jnp.int32, shape, 2)
    idx = ((s_i * batch + b_i) * d_model + d_i).astype(jnp.uint32)
    h = idx ^ (seed_u32 * jnp.uint32(0x9E3779B9))
    h = h ^ (h >> 16)
    h = h * jnp.uint32(0x85EBCA6B)
    h = h ^ (h >> 13)
    h = h * jnp.uint32(0xC2B2AE35)
    h = h ^ (h >> 16)
    return h >= jnp.uint32(thresh)


def _choose_tile_s(S, B, D):
    """Rows of S per block: ~2 MiB padded f32 footprint, >=4 grid steps if possible."""
    pad_b = -(-B // 8) * 8
    pad_d = -(-D // 128) * 128
    slab_bytes = pad_b * pad_d * 4            # one sequence step's padded f32 footprint
    target = 2 * 1024 * 1024
    tile_s = max(1, min(S, target // slab_bytes))
    # Keep >= ~4 grid steps where possible so the "parallel" axis feeds both v7x TCs.
    if tile_s > 1 and -(-S // tile_s) < 4:
        tile_s = max(1, -(-S // 4))
    return tile_s


def positional_encoding(x, *, dropout_p=0.1, training=False, seed=0,
                        max_len=5000, batch_first=False,
                        min_pallas_elements=64 * 1024):
    """Pallas forward of PositionalEncoding.

    x: [S, B, D] if not batch_first else [B, S, D].
    """
    if batch_first:
        # TODO(synk): a dedicated batch-first grid layout would avoid these transposes.
        y = positional_encoding(jnp.swapaxes(x, 0, 1), dropout_p=dropout_p,
                                training=training, seed=seed, max_len=max_len,
                                batch_first=False,
                                min_pallas_elements=min_pallas_elements)
        return jnp.swapaxes(y, 0, 1)

    S, B, D = x.shape
    assert S <= max_len, "sequence longer than max_len"
    assert D % 2 == 0, "d_model must be even (matches the sinusoidal init)"

    apply_dropout = training and dropout_p > 0.0
    if apply_dropout and dropout_p >= 1.0:
        return jnp.zeros_like(x)
    keep_p = 1.0 - float(dropout_p)
    inv_keep = 1.0 / keep_p                                           # static python float
    thresh = min(int(round(float(dropout_p) * (2.0 ** 32))), 2 ** 32 - 1)

    n = S * B * D
    if n < min_pallas_elements:
        # Tiny inputs: a fused XLA elementwise op beats Pallas launch overhead.
        # TODO(synk): fallback uses jax.random for dropout, so the mask differs from
        # the Pallas hash-PRNG path for the same seed (keep-probability matches).
        pe = sinusoidal_pe_table(S, D)
        y = x.astype(jnp.float32) + pe[:, None, :]
        if apply_dropout:
            keep = jax.random.bernoulli(jax.random.PRNGKey(seed), keep_p, y.shape)
            y = jnp.where(keep, y * inv_keep, 0.0)
        return y.astype(x.dtype)

    tile_s = _choose_tile_s(S, B, D)
    grid = (pl.cdiv(S, tile_s),)        # ragged last block: Pallas masks its stores
    out_shape = jax.ShapeDtypeStruct((S, B, D), x.dtype)
    compiler_params = pltpu.CompilerParams(
        dimension_semantics=("parallel",),
        vmem_limit_bytes=32 * 1024 * 1024)

    if not apply_dropout:
        def kernel(x_ref, o_ref):
            s0 = pl.program_id(0) * tile_s
            pe = _pe_slab(tile_s, D, s0)                              # (tile_s, 1, D)
            o_ref[...] = (x_ref[...].astype(jnp.float32) + pe).astype(o_ref.dtype)

        spec = pl.BlockSpec((tile_s, B, D), lambda i: (i, 0, 0))
        return pl.pallas_call(
            kernel,
            out_shape=out_shape,
            grid_spec=pltpu.PrefetchScalarGridSpec(
                num_scalar_prefetch=0, grid=grid, in_specs=[spec], out_specs=spec),
            compiler_params=compiler_params,
        )(x)

    # Training-mode forward: add + inverted dropout via a counter-based hash PRNG.
    # TODO(synk): mask does not bit-match torch.nn.Dropout; keep-prob / scaling semantics match.
    def kernel(seed_ref, x_ref, o_ref):
        s0 = pl.program_id(0) * tile_s
        pe = _pe_slab(tile_s, D, s0)
        y = x_ref[...].astype(jnp.float32) + pe
        keep = _hash_keep_mask((tile_s, B, D), s0, B, D,
                               seed_ref[0].astype(jnp.uint32), thresh)
        o_ref[...] = jnp.where(keep, y * inv_keep, 0.0).astype(o_ref.dtype)

    spec = pl.BlockSpec((tile_s, B, D), lambda i, seed: (i, 0, 0))
    return pl.pallas_call(
        kernel,
        out_shape=out_shape,
        grid_spec=pltpu.PrefetchScalarGridSpec(
            num_scalar_prefetch=1, grid=grid, in_specs=[spec], out_specs=spec),
        compiler_params=compiler_params,
    )(jnp.array([seed], dtype=jnp.int32), x)


if __name__ == "__main__":
    # --- small shape consistent with the module: seq=8, batch=2, d_model=32 ----
    S, B, D, MAX_LEN = 8, 2, 32, 64
    key = jax.random.PRNGKey(0)
    x = jax.random.normal(key, (S, B, D), dtype=jnp.float32)
    ref = x + sinusoidal_pe_table(MAX_LEN, D)[:S].reshape(S, 1, D)

    # Force the Pallas path even at toy size (min_pallas_elements=0).
    out = jax.block_until_ready(
        positional_encoding(x, dropout_p=0.1, training=False, max_len=MAX_LEN,
                            min_pallas_elements=0))
    assert out.shape == (S, B, D)
    assert jnp.allclose(out, ref, atol=1e-4, rtol=1e-4)

    # Default settings: tiny input takes the fused-XLA fallback; same numbers.
    out_fb = jax.block_until_ready(
        positional_encoding(x, dropout_p=0.1, training=False, max_len=MAX_LEN))
    assert jnp.allclose(out_fb, ref, atol=1e-4, rtol=1e-4)

    # --- larger shape: multi-block grid, ragged last block, parallel axis -------
    S2, B2, D2 = 65, 64, 128
    x_big = jax.random.normal(jax.random.PRNGKey(1), (S2, B2, D2), dtype=jnp.float32)
    out_big = jax.block_until_ready(
        positional_encoding(x_big, dropout_p=0.1, training=False, max_len=128))
    ref_big = x_big + sinusoidal_pe_table(S2, D2)[:, None, :]
    assert out_big.shape == (S2, B2, D2)
    assert jnp.allclose(out_big, ref_big, atol=1e-3, rtol=1e-3)

    # --- training path (dropout) through the Pallas kernel ----------------------
    S3, B3, D3, P = 16, 8, 128, 0.1
    x_t = jax.random.normal(jax.random.PRNGKey(2), (S3, B3, D3), dtype=jnp.float32)
    out_t = jax.block_until_ready(
        positional_encoding(x_t, dropout_p=P, training=True, seed=123, max_len=64,
                            min_pallas_elements=0))
    assert out_t.shape == (S3, B3, D3)
    assert bool(jnp.all(jnp.isfinite(out_t)))
    drop_frac = float(jnp.mean(out_t == 0.0))
    assert 0.05 <= drop_frac <= 0.2, drop_frac
    # Kept elements must equal (x + pe) / keep_p exactly (inverted-dropout scaling).
    y_full = (x_t + sinusoidal_pe_table(S3, D3)[:, None, :]) / (1.0 - P)
    kept = out_t != 0.0
    assert jnp.allclose(jnp.where(kept, out_t, 0.0), jnp.where(kept, y_full, 0.0),
                        atol=1e-4, rtol=1e-4)

    print("KERNEL_OK")
</pallas_src>

<mosaic_0001>
module attributes {stable_mosaic.version = 11 : i64} {
  func.func @kernel(%arg0: i32, %arg1: memref<2x2x32xf32, #tpu.memory_space<vmem>>, %arg2: memref<2x2x32xf32, #tpu.memory_space<vmem>>) attributes {dimension_semantics = [#tpu.dimension_semantics<parallel>], iteration_bounds = array<i64: 4>, scalar_prefetch = 0 : i64, scratch_operands = 0 : i64, tpu.core_type = #tpu.core_type<tc>, window_params = [{transform_indices = @transform_0, window_bounds = array<i64: 2, 2, 32>}, {transform_indices = @transform_1, window_bounds = array<i64: 2, 2, 32>}]} {
    %c2_i32 = arith.constant 2 : i32
    %0 = arith.muli %arg0, %c2_i32 : i32
    %1 = tpu.iota {dimensions = array<i32: 0>} : vector<2x1x1xi32>
    %2 = vector.broadcast %0 : i32 to vector<2x1x1xi32>
    %3 = arith.addi %2, %1 : vector<2x1x1xi32>
    %4 = arith.sitofp %3 : vector<2x1x1xi32> to vector<2x1x1xf32>
    %5 = tpu.iota {dimensions = array<i32: 2>} : vector<1x1x32xi32>
    %c1_i32 = arith.constant 1 : i32
    %6 = vector.broadcast %c1_i32 : i32 to vector<1x1x32xi32>
    %7 = arith.shrsi %5, %6 : vector<1x1x32xi32>
    %8 = arith.sitofp %7 : vector<1x1x32xi32> to vector<1x1x32xf32>
    %cst = arith.constant -0.575646281 : f32
    %9 = vector.broadcast %cst : f32 to vector<1x1x32xf32>
    %10 = arith.mulf %8, %9 : vector<1x1x32xf32>
    %11 = math.exp %10 : vector<1x1x32xf32>
    %c1_i32_0 = arith.constant 1 : i32
    %12 = vector.broadcast %c1_i32_0 : i32 to vector<1x1x32xi32>
    %13 = arith.andi %5, %12 : vector<1x1x32xi32>
    %14 = arith.sitofp %13 : vector<1x1x32xi32> to vector<1x1x32xf32>
    %cst_1 = arith.constant 1.57079637 : f32
    %15 = vector.broadcast %cst_1 : f32 to vector<1x1x32xf32>
    %16 = arith.mulf %14, %15 : vector<1x1x32xf32>
    %17 = vector.broadcast %4 : vector<2x1x1xf32> to vector<2x1x32xf32>
    %18 = vector.broadcast %11 : vector<1x1x32xf32> to vector<2x1x32xf32>
    %19 = arith.mulf %17, %18 : vector<2x1x32xf32>
    %20 = vector.broadcast %16 : vector<1x1x32xf32> to vector<2x1x32xf32>
    %21 = arith.addf %19, %20 : vector<2x1x32xf32>
    %22 = math.sin %21 : vector<2x1x32xf32>
    %c0 = arith.constant 0 : index
    %c0_2 = arith.constant 0 : index
    %c0_3 = arith.constant 0 : index
    %23 = vector.load %arg1[%c0, %c0_2, %c0_3] : memref<2x2x32xf32, #tpu.memory_space<vmem>>, vector<2x2x32xf32>
    %24 = vector.broadcast %22 : vector<2x1x32xf32> to vector<2x2x32xf32>
    %25 = arith.addf %23, %24 : vector<2x2x32xf32>
    %c0_4 = arith.constant 0 : index
    %c0_5 = arith.constant 0 : index
    %c0_6 = arith.constant 0 : index
    %26 = vector.load %arg2[%c0_4, %c0_5, %c0_6] : memref<2x2x32xf32, #tpu.memory_space<vmem>>, vector<2x2x32xf32>
    tpu.vector_store %arg2[%c0_4, %c0_5, %c0_6], %25 {strides = array<i32>} : memref<2x2x32xf32, #tpu.memory_space<vmem>>, vector<2x2x32xf32>,
    return
  }
  func.func @transform_0(%arg0: i32) -> (i32, i32, i32) {
    %c0_i32 = arith.constant 0 : i32
    %c0_i32_0 = arith.constant 0 : i32
    %c0_i32_1 = arith.constant 0 : i32
    return %arg0, %c0_i32, %c0_i32_0 : i32, i32, i32
  }
  func.func @transform_1(%arg0: i32) -> (i32, i32, i32) {
    %c0_i32 = arith.constant 0 : i32
    %c0_i32_0 = arith.constant 0 : i32
    %c0_i32_1 = arith.constant 0 : i32
    return %arg0, %c0_i32, %c0_i32_0 : i32, i32, i32
  }
}

</mosaic_0001>

<llo_original>
// kernel: tpu_custom_call.1
$region0: #{tpu_custom_call.1}
  #allocation0 [shape = 'u32[]', space=smem, size = 0x4, offset = 0x4, fixed_abs, tag = 'smem constant byte address 0x4 - core index']
  #allocation1 [shape = 'u32[144,128]{1,0:T(1,128)}', space=vmem, size = 0x12000, scoped, tag = 'internal scratch']
  %s0 = inlined_call_operand.hbm [shape: f32[8,2,32], index: 0, kind: input, shape index: {}]
  %s1 = inlined_call_operand.hbm [shape: f32[8,2,32], index: 1, kind: output, shape index: {}]
  %s2 = sld [smem:[#allocation0]]
  $region41: #{tpu_custom_call.1} parent=0
    _
  %s4 = ssub.s32 1, %s2
  %s5 = scalar_select 0, %s4, %s2
  $region1: #{tpu_custom_call.1} parent=0
    #allocation2 [shape = 'u8[4096]{0}', space=vmem, size = 0x1000, scoped, tag = 'input window, operand 0']
    #allocation3 [shape = 's32[2]{0}', space=sflag, size = 0x8, scoped, tag = 'scoped memory for tpu_custom_call.1']
    #allocation4 [shape = 's32[2]{0}', space=sflag, size = 0x8, scoped, tag = 'scoped memory for tpu_custom_call.1']
    #allocation5 [shape = 'u8[4096]{0}', space=vmem, size = 0x1000, scoped, tag = 'output window, operand 0']
    %6 = vsyncpa [#allocation3], 0
    %s7 = scalar_lea.sflag [#allocation3], 1
    %8 = vsyncpa %s7, 0
    %9 = vsyncpa [#allocation4], 0
    %s10 = scalar_lea.sflag [#allocation4], 1
    %11 = vsyncpa %s10, 0
    loop: start=0, step=1, limit=6
    $region2: #{tpu_custom_call.1} parent=1 // loop_pre_header
      _
    $region3: #{tpu_custom_call.1} parent=1 // loop_header
      %s13 = sphi 0, %s17
      %p14 = scmp.ge.s32.totalorder %s13, 6
      %s23 = sphi 0, %s25
      %s26 = sphi 0, %s23
      %s27 = sphi 0, %s26
      %s43 = sphi 0, %s27
      %s49 = sphi 0, %s51
      %s52 = sphi 0, %s49
      %s53 = sphi 0, %s52
      %s69 = sphi 0, %s53
    $region4: #{tpu_custom_call.1} parent=1 // loop_header_branch
      %16 = sbr.rel (%p14) target = $region8
    $region5: #{tpu_custom_call.1} parent=1 // loop_body
      %s18 = ssub.s32 %s13, 1
      %s19 = ssub.s32 %s13, 2
      %s20 = sadd.s32 %s13, 1
      %s21 = ssub.s32 %s13, %s20
      %p22 = scmp.eq.s32.totalorder %s21, 0
      %s24 = sadd.s32 %s23, 1
      %s25 = scalar_select %p22, %s23, %s24
      %p28 = pneg %p22
      %p29 = scmp.eq.s32.totalorder %s13, 3
      %p30 = por %p28, %p29
      %p31 = scmp.ne.s32.totalorder %s23, %s26
      %p32 = scmp.eq.s32.totalorder %s13, 0
      %p33 = por %p31, %p32
      %p34 = scmp.ne.s32.totalorder %s23, %s26
      %p35 = scmp.eq.s32.totalorder %s18, 3
      %p36 = por %p34, %p35
      %p37 = scmp.ne.s32.totalorder %s26, %s27
      %p38 = scmp.eq.s32.totalorder %s18, 0
      %p39 = por %p37, %p38
      %p40 = scmp.ne.s32.totalorder %s26, %s27
      %p41 = scmp.eq.s32.totalorder %s19, 3
      %p42 = por %p40, %p41
      %p44 = scmp.ne.s32.totalorder %s27, %s43
      %p45 = scmp.eq.s32.totalorder %s19, 0
      %p46 = por %p44, %p45
      %s47 = ssub.s32 %s13, %s20
      %p48 = scmp.eq.s32.totalorder %s47, 0
      %s50 = sadd.s32 %s49, 1
      %s51 = scalar_select %p48, %s49, %s50
      %p54 = pneg %p48
      %p55 = scmp.eq.s32.totalorder %s13, 3
      %p56 = por %p54, %p55
      %p57 = scmp.ne.s32.totalorder %s49, %s52
      %p58 = scmp.eq.s32.totalorder %s13, 0
      %p59 = por %p57, %p58
      %p60 = scmp.ne.s32.totalorder %s49, %s52
      %p61 = scmp.eq.s32.totalorder %s18, 3
      %p62 = por %p60, %p61
      %p63 = scmp.ne.s32.totalorder %s52, %s53
      %p64 = scmp.eq.s32.totalorder %s18, 0
      %p65 = por %p63, %p64
      %p66 = scmp.ne.s32.totalorder %s52, %s53
      %p67 = scmp.eq.s32.totalorder %s19, 3
      %p68 = por %p66, %p67
      %p70 = scmp.ne.s32.totalorder %s53, %s69
      %p71 = scmp.eq.s32.totalorder %s19, 0
      %p72 = por %p70, %p71
      %p73 = scmp.le.s32.totalorder 1, %s13
      %p74 = scmp.lt.s32.totalorder %s13, 5
      %p75 = pnand %p73, %p74
      %p76 = pneg %p75
      // Predicated region
      $region9: #{tpu_custom_call.1} parent=5 // pred_check
        _
      $region10: #{tpu_custom_call.1} parent=5 // pred_check_branch
        %78 = sbr.rel (%p75) target = $region12
      $region11: #{tpu_custom_call.1} parent=5 // pred_region
        %s79 = ssub.s32 %s13, 1
      $region12: #{tpu_custom_call.1} parent=5 // pred_fallthru
        _
      %p80 = scmp.lt.s32.totalorder %s13, 4
      // Predicated region
      $region13: #{tpu_custom_call.1} parent=5 // pred_check
        %p81 = pneg %p80
      $region14: #{tpu_custom_call.1} parent=5 // pred_check_branch
        %83 = sbr.rel (%p81) target = $region16
      $region15: #{tpu_custom_call.1} parent=5 // pred_region
        // Predicated region
        $region17: #{tpu_custom_call.1} parent=15 // pred_check
          %p84 = pneg %p33
        $region18: #{tpu_custom_call.1} parent=15 // pred_check_branch
          %86 = sbr.rel (%p84) target = $region20
        $region19: #{tpu_custom_call.1} parent=15 // pred_region
          %s87 = sand.u32 %s23, 1
          %s88 = scalar_lea.sflag [#allocation3], %s87
          %s89 = sand.u32 %s23, 1
          %s90 = smul.addr %s89, 4
          %s91 = scalar_lea.vmem [#allocation2], %s90
          %s92 = smul.u32 2, %s13
          %s94 = ssub.s32 64, 64
          %95 = vsyncadd %s88, %s94
          %s96 = smul.addr %s92, 32
          %s97 = scalar_lea.hbm %s0, %s96
          %s98 = sshll.u32 %s91, 4
          %s99 = int_to_ptr.vmem [resolvable:$true] %s98
          %104 = dma.hbm_to_vmem [thread:$0]  %s97, 64, %s99, %s88, 32, 32, 2
        $region20: #{tpu_custom_call.1} parent=15 // pred_fallthru
          _
      $region16: #{tpu_custom_call.1} parent=5 // pred_fallthru
        _
      %p105 = scmp.le.s32.totalorder 1, %s13
      %p106 = scmp.lt.s32.totalorder %s13, 5
      %p107 = pnand %p105, %p106
      %p108 = pneg %p107
      // Predicated region
      $region21: #{tpu_custom_call.1} parent=5 // pred_check
        _
      $region22: #{tpu_custom_call.1} parent=5 // pred_check_branch
        %110 = sbr.rel (%p107) target = $region24
      $region23: #{tpu_custom_call.1} parent=5 // pred_region
        %s111 = ssub.s32 %s13, 1
        %s112 = sand.u32 %s26, 1
        %s113 = scalar_lea.sflag [#allocation3], %s112
        %s114 = sand.u32 %s26, 1
        %s115 = smul.addr %s114, 4
        %s116 = scalar_lea.vmem [#allocation2], %s115
        // Predicated region
        $region25: #{tpu_custom_call.1} parent=23 // pred_check
          %p117 = pneg %p39
        $region26: #{tpu_custom_call.1} parent=23 // pred_check_branch
          %119 = sbr.rel (%p117) target = $region28
        $region27: #{tpu_custom_call.1} parent=23 // pred_region
          %120 = dma.done %s113, 64
        $region28: #{tpu_custom_call.1} parent=23 // pred_fallthru
          _
        %s121 = sand.u32 %s26, 1
        %s122 = scalar_lea.sflag [#allocation3], %s121
        %s123 = sand.u32 %s26, 1
        %s124 = smul.addr %s123, 4
        %s125 = scalar_lea.vmem [#allocation2], %s124
        %p126 = pneg %p39
        %p127 = pneg %p36
        %p128 = pneg %p65
        %p129 = pneg %p62
        %s130 = sand.u32 %s52, 1
        %s131 = scalar_lea.sflag [#allocation4], %s130
        %s132 = sand.u32 %s52, 1
        %s133 = smul.addr %s132, 4
        %s134 = scalar_lea.vmem [#allocation5], %s133
        %s135 = smul.u32 2, %s18
        %s136 = smul.u32 2, %s18
        %s137 = smul.u32 %s18, 2
        %v138 = vstv %s137
        %v139 = vadd.s32 %v138, 1
        %v140 = vcvt.s32.f32 %v138
        %v141 = vcvt.s32.f32 %v139
        %v142 = vlaneseq
        %v143 = vand.u32 %v142, 127
        %v144 = vshra.s32 %v143, 1
        %v145 = vcvt.s32.f32 %v144
        %v146 = vmul.f32 %v145, -0.5756463
        %v147 = vmul.f32 %v146, 1.442695
        %v148 = vpow.pop %v147
        %v149 = vand.u32 %v143, 1
        %v150 = vcvt.s32.f32 %v149
        %v151 = vmul.f32 %v150, 1.5707964
        %v152 = vmul.f32 %v140, %v148
        %v153 = vmul.f32 %v141, %v148
        %v154 = vadd.f32 %v152, %v151
        %v155 = vadd.f32 %v153, %v151
        %v156 = vand.u32 2147483647, %v154
        %vm157 = vcmp.le.f32.partialorder %v156, 0.7853982
        %vm158 = vcmp.lt.s32.totalorder %v154, 0
        %v159 = vand.u32 %v154, 2139095040
        %v160 = vshrl.u32 %v159, 23
        %v161 = vsub.s32 %v160, 127
        %v162 = vand.u32 2147483647, %v154
        %v163 = vand.u32 %v162, 8388607
        %v164 = vor.u32 %v163, 8388608
        %v165 = vsub.s32 0, %v164
        %v166 = vadd.s32 %v161, 1
        %vm167 = vcmp.gt.s32.totalorder %v166, 0
        %v168 = vsel %vm167, %v166, 0
        %v169 = vshrl.u32 %v168, 5
        %v170 = vand.u32 %v168, 31
        %v171 = vsub.s32 32, %v170
        %v172 = vshrl.u32 683565275, %v171
        %v173 = vshll.u32 683565275, %v170
        %v174 = vshrl.u32 2475754826, %v171
        %v175 = vor.u32 %v173, %v174
        %v176 = vshll.u32 2475754826, %v170
        %v177 = vshrl.u32 2131351028, %v171
        %v178 = vor.u32 %v176, %v177
        %v179 = vshll.u32 2131351028, %v170
        %v180 = vshrl.u32 2102212464, %v171
        %v181 = vor.u32 %v179, %v180
        %v182 = vshll.u32 2102212464, %v170
        %v183 = vshrl.u32 920167782, %v171
        %v184 = vor.u32 %v182, %v183
        %v185 = vshll.u32 920167782, %v170
        %v186 = vshrl.u32 1326507024, %v171
        %v187 = vor.u32 %v185, %v186
        %vm188 = vcmp.lt.s32.totalorder %v169, 1
        %vm189 = vcmp.lt.s32.totalorder %v169, 2
        %vm190 = vcmp.lt.s32.totalorder %v169, 3
        %vm191 = vcmp.lt.s32.totalorder %v169, 4
        %v192 = vsel %vm188, %v172, %v175
        %v193 = vsel %vm191, %v181, 2102212464
        %v194 = vsel %vm190, %v178, %v193
        %v195 = vsel %vm189, %v192, %v194
        %v196 = vsel %vm188, %v175, %v178
        %v197 = vsel %vm191, %v184, 920167782
        %v198 = vsel %vm190, %v181, %v197
        %v199 = vsel %vm189, %v196, %v198
        %v200 = vsel %vm188, %v178, %v181
        %v201 = vsel %vm191, %v187, 1326507024
        %v202 = vsel %vm190, %v184, %v201
        %v203 = vsel %vm189, %v200, %v202
        %v204 = vshll.u32 %v164, 8
        %v205 = vmul.u32.u64.compose %v204, %v203
        %v206 = vextract.low.u32 %v205
        %v207 = vextract.high.u32 %v205
        %v208 = vmul.u32.u64.compose %v204, %v199
        %v209 = vextract.low.u32 %v208
        %v210 = vextract.high.u32 %v208
        %v211 = vmul.u32 %v204, %v195
        %v212 = vadd.s32 %v207, %v209
        %vm213 = vc.u32 %v207, %v209
        %v214 = vadd.s32 %v210, 1
        %v215 = vsel %vm213, %v214, %v210
        %v216 = vadd.s32 %v211, %v215
        %v217 = vadd.s32 %v216, 536870912
        %v218 = vshrl.u32 %v217, 30
        %v219 = vshll.u32 %v218, 30
        %v220 = vsub.s32 %v216, %v219
        %vm221 = vcmp.lt.s32.totalorder %v220, 0
        %v222 = vsub.s32 0, %v220
        %v223 = vsel %vm221, %v222, %v220
        %v224 = vclz %v223
        %v225 = vsub.s32 %v224, 2
        %vm226 = vcmp.gt.s32.totalorder 0, %v225
        %v227 = vsel %vm226, 0, %v225
        %v228 = vsub.s32 32, %v227
        %v229 = vshll.u32 %v220, %v227
        %v230 = vshrl.u32 %v212, %v228
        %v231 = vor.u32 %v229, %v230
        %v232 = vsub.s32 4294967266, %v227
        %v233 = vadd.s32 %v232, 127
        %v234 = vshll.u32 %v233, 23
        %v235 = vor.u32 4788187, %v234
        %v236 = vand.u32 2147483647, %v235
        %v238 = vcvt.s32.f32 %v231
        %v239 = vmul.f32 %v238, %v236
        %v240 = vxor.u32 %v239, 2147483648
        %v241 = vsel %vm158, %v240, %v239
        %v242 = vsub.s32 4, %v218
        %v243 = vsel %vm158, %v242, %v218
        %v244 = vsel %vm157, %v154, %v241
        %v245 = vsel %vm157, 0, %v243
        %v246 = vcosq.f32.pop %v244
        %v247 = vsinq.f32.pop %v244
        %vm248 = vweird.f32 %v154
        %v249 = vadd.s32 %v245, 3
        %v250 = vand.u32 %v249, 3
        %vm251 = vcmp.lt.s32.totalorder %v250, 2
        %vm252 = vcmp.eq.s32.totalorder %v250, 0
        %v253 = vxor.u32 %v247, 2147483648
        %v254 = vsel %vm252, %v246, %v253
        %vm255 = vcmp.eq.s32.totalorder %v250, 2
        %v256 = vxor.u32 %v246, 2147483648
        %v257 = vsel %vm255, %v256, %v247
        %v258 = vsel %vm251, %v254, %v257
        %v259 = vsel %vm248, nan, %v258
        %v260 = vand.u32 2147483647, %v155
        %vm261 = vcmp.le.f32.partialorder %v260, 0.7853982
        %vm262 = vcmp.lt.s32.totalorder %v155, 0
        %v263 = vand.u32 %v155, 2139095040
        %v264 = vshrl.u32 %v263, 23
        %v265 = vsub.s32 %v264, 127
        %v266 = vand.u32 2147483647, %v155
        %v267 = vand.u32 %v266, 8388607
        %v268 = vor.u32 %v267, 8388608
        %v269 = vsub.s32 0, %v268
        %v270 = vadd.s32 %v265, 1
        %vm271 = vcmp.gt.s32.totalorder %v270, 0
        %v272 = vsel %vm271, %v270, 0
        %v273 = vshrl.u32 %v272, 5
        %v274 = vand.u32 %v272, 31
        %v275 = vsub.s32 32, %v274
        %v276 = vshrl.u32 683565275, %v275
        %v277 = vshll.u32 683565275, %v274
        %v278 = vshrl.u32 2475754826, %v275
        %v279 = vor.u32 %v277, %v278
        %v280 = vshll.u32 2475754826, %v274
        %v281 = vshrl.u32 2131351028, %v275
        %v282 = vor.u32 %v280, %v281
        %v283 = vshll.u32 2131351028, %v274
        %v284 = vshrl.u32 2102212464, %v275
        %v285 = vor.u32 %v283, %v284
        %v286 = vshll.u32 2102212464, %v274
        %v287 = vshrl.u32 920167782, %v275
        %v288 = vor.u32 %v286, %v287
        %v289 = vshll.u32 920167782, %v274
        %v290 = vshrl.u32 1326507024, %v275
        %v291 = vor.u32 %v289, %v290
        %vm292 = vcmp.lt.s32.totalorder %v273, 1
        %vm293 = vcmp.lt.s32.totalorder %v273, 2
        %vm294 = vcmp.lt.s32.totalorder %v273, 3
        %vm295 = vcmp.lt.s32.totalorder %v273, 4
        %v296 = vsel %vm292, %v276, %v279
        %v297 = vsel %vm295, %v285, 2102212464
        %v298 = vsel %vm294, %v282, %v297
        %v299 = vsel %vm293, %v296, %v298
        %v300 = vsel %vm292, %v279, %v282
        %v301 = vsel %vm295, %v288, 920167782
        %v302 = vsel %vm294, %v285, %v301
        %v303 = vsel %vm293, %v300, %v302
        %v304 = vsel %vm292, %v282, %v285
        %v305 = vsel %vm295, %v291, 1326507024
        %v306 = vsel %vm294, %v288, %v305
        %v307 = vsel %vm293, %v304, %v306
        %v308 = vshll.u32 %v268, 8
        %v309 = vmul.u32.u64.compose %v308, %v307
        %v310 = vextract.low.u32 %v309
        %v311 = vextract.high.u32 %v309
        %v312 = vmul.u32.u64.compose %v308, %v303
        %v313 = vextract.low.u32 %v312
        %v314 = vextract.high.u32 %v312
        %v315 = vmul.u32 %v308, %v299
        %v316 = vadd.s32 %v311, %v313
        %vm317 = vc.u32 %v311, %v313
        %v318 = vadd.s32 %v314, 1
        %v319 = vsel %vm317, %v318, %v314
        %v320 = vadd.s32 %v315, %v319
        %v321 = vadd.s32 %v320, 536870912
        %v322 = vshrl.u32 %v321, 30
        %v323 = vshll.u32 %v322, 30
        %v324 = vsub.s32 %v320, %v323
        %vm325 = vcmp.lt.s32.totalorder %v324, 0
        %v326 = vsub.s32 0, %v324
        %v327 = vsel %vm325, %v326, %v324
        %v328 = vclz %v327
        %v329 = vsub.s32 %v328, 2
        %vm330 = vcmp.gt.s32.totalorder 0, %v329
        %v331 = vsel %vm330, 0, %v329
        %v332 = vsub.s32 32, %v331
        %v333 = vshll.u32 %v324, %v331
        %v334 = vshrl.u32 %v316, %v332
        %v335 = vor.u32 %v333, %v334
        %v336 = vsub.s32 4294967266, %v331
        %v337 = vadd.s32 %v336, 127
        %v338 = vshll.u32 %v337, 23
        %v339 = vor.u32 4788187, %v338
        %v340 = vand.u32 2147483647, %v339
        %v342 = vcvt.s32.f32 %v335
        %v343 = vmul.f32 %v342, %v340
        %v344 = vxor.u32 %v343, 2147483648
        %v345 = vsel %vm262, %v344, %v343
        %v346 = vsub.s32 4, %v322
        %v347 = vsel %vm262, %v346, %v322
        %v348 = vsel %vm261, %v155, %v345
        %v349 = vsel %vm261, 0, %v347
        %v350 = vcosq.f32.pop %v348
        %v351 = vsinq.f32.pop %v348
        %vm352 = vweird.f32 %v155
        %v353 = vadd.s32 %v349, 3
        %v354 = vand.u32 %v353, 3
        %vm355 = vcmp.lt.s32.totalorder %v354, 2
        %vm356 = vcmp.eq.s32.totalorder %v354, 0
        %v357 = vxor.u32 %v351, 2147483648
        %v358 = vsel %vm356, %v350, %v357
        %vm359 = vcmp.eq.s32.totalorder %v354, 2
        %v360 = vxor.u32 %v350, 2147483648
        %v361 = vsel %vm359, %v360, %v351
        %v362 = vsel %vm355, %v358, %v361
        %v363 = vsel %vm352, nan, %v362
        %v364 = vld [vmem:[%s116] sm:$0x3]
        %v365 = vld [vmem:[%s116 + $0x2] sm:$0x3]
        %v366 = vadd.f32 %v364, %v259
        %v367 = vadd.f32 %v365, %v363
        %vm368 = vcmask 254976
        %369 = vst.msk [vmem:[%s134] sm:$0x3] %vm368, %v366
        %370 = vst.msk [vmem:[%s134 + $0x2] sm:$0x3] %vm368, %v367
        %s371 = sand.u32 %s52, 1
        %s372 = scalar_lea.sflag [#allocation4], %s371
        %s373 = sand.u32 %s52, 1
        %s374 = smul.addr %s373, 4
        %s375 = scalar_lea.vmem [#allocation5], %s374
        // Predicated region
        $region29: #{tpu_custom_call.1} parent=23 // pred_check
          %p376 = pneg %p62
        $region30: #{tpu_custom_call.1} parent=23 // pred_check_branch
          %378 = sbr.rel (%p376) target = $region32
        $region31: #{tpu_custom_call.1} parent=23 // pred_region
          %s379 = smul.u32 2, %s18
          %s381 = ssub.s32 64, 64
          %382 = vsyncadd %s372, %s381
          %s383 = smul.addr %s379, 32
          %s384 = scalar_lea.hbm %s1, %s383
          %s385 = sshll.u32 %s375, 4
          %s386 = int_to_ptr.vmem [resolvable:$true] %s385
          %391 = dma.vmem_to_hbm [thread:$0]  %s386, 64, %s384, %s372, 32, 32, 2
        $region32: #{tpu_custom_call.1} parent=23 // pred_fallthru
          _
      $region24: #{tpu_custom_call.1} parent=5 // pred_fallthru
        _
      %p392 = scmp.le.s32.totalorder 2, %s13
      // Predicated region
      $region33: #{tpu_custom_call.1} parent=5 // pred_check
        %p393 = pneg %p392
      $region34: #{tpu_custom_call.1} parent=5 // pred_check_branch
        %395 = sbr.rel (%p393) target = $region36
      $region35: #{tpu_custom_call.1} parent=5 // pred_region
        %s396 = ssub.s32 %s13, 2
        // Predicated region
        $region37: #{tpu_custom_call.1} parent=35 // pred_check
          %p397 = pneg %p68
        $region38: #{tpu_custom_call.1} parent=35 // pred_check_branch
          %399 = sbr.rel (%p397) target = $region40
        $region39: #{tpu_custom_call.1} parent=35 // pred_region
          %s400 = sand.u32 %s53, 1
          %s401 = scalar_lea.sflag [#allocation4], %s400
          %s402 = sand.u32 %s53, 1
          %s403 = smul.addr %s402, 4
          %s404 = scalar_lea.vmem [#allocation5], %s403
          %405 = dma.done %s401, 64
        $region40: #{tpu_custom_call.1} parent=35 // pred_fallthru
          _
      $region36: #{tpu_custom_call.1} parent=5 // pred_fallthru
        _
    $region6: #{tpu_custom_call.1} parent=1 // loop_footer
      %s17 = sadd.s32 1, %s13
    $region7: #{tpu_custom_call.1} parent=1 // loop_footer_branch
      %12 = sbr.rel target = $region3
    $region8: #{tpu_custom_call.1} parent=1 // loop_exit
      _
    %406 = vsyncpa [#allocation3], 1
    %s407 = scalar_lea.sflag [#allocation3], 1
    %408 = vsyncpa %s407, 1
    %409 = vsyncpa [#allocation4], 1
    %s410 = scalar_lea.sflag [#allocation4], 1
    %411 = vsyncpa %s410, 1

</llo_original>
